<compile_context>
chip_gen: v7x
topology: tpu7x:2x2x1
jax: 0.10.0
libtpu: 0.0.40
codegen_flags: <defaults>
</compile_context>

<pallas_src>
import functools
import math

import jax
import jax.numpy as jnp
from jax import lax
from jax.experimental import pallas as pl
from jax.experimental.pallas import tpu as pltpu


# ----------------------------- kernel ----------------------------------------
def _loss_kernel(pred_ref, tgt_ref, vis_ref, mean_ref, dpd_ref, wpair_ref,
                 row_ref, col_ref, out_ref):
    """One grid step = (batch block, stack). Emits [sa, pos, wpdd] partial sums
    in lanes 0..2 of a (1, 128) output block."""
    pred = pred_ref[...].astype(jnp.float32)     # (TB, C, HW)
    tgt = tgt_ref[...].astype(jnp.float32)       # (TB, C, HW)
    vis = vis_ref[...]                           # (TB, C, 1)  f32
    mean = mean_ref[...]                         # (TB, C, 2)  f32
    dpd = dpd_ref[...]                           # (TB, C, C)  f32 (precomputed)
    wpair = wpair_ref[...]                       # (TB, C, C)  f32 (precomputed)
    rowp = row_ref[...]                          # (1, 1, HW)  row / H
    colp = col_ref[...]                          # (1, 1, HW)  col / W
    C = pred.shape[1]

    # ---- JointsMSELoss numerator: sum (vis * (pred - gt))^2 -----------------
    wdiff = (pred - tgt) * vis
    sa = jnp.sum(wdiff * wdiff)

    # ---- centroid of positive gt pixels (single-blob cv2 approximation) ----
    # TODO(synk): cv2.connectedComponentsWithStats picks the centroid of one
    #             labeled component; this uses all positive pixels (identical
    #             for single-blob gaussian heatmaps).
    mask = (tgt > 0.0).astype(jnp.float32)                       # (TB, C, HW)
    cnt = jnp.sum(mask, axis=-1, keepdims=True)                  # (TB, C, 1)
    inv = jnp.where(cnt > 0.0, 1.0 / jnp.maximum(cnt, 1.0), 0.0)
    cr = jnp.sum(mask * rowp, axis=-1, keepdims=True) * inv      # (TB, C, 1)
    cc = jnp.sum(mask * colp, axis=-1, keepdims=True) * inv      # (TB, C, 1)

    # ---- skeleton position term: sum_j vis_j * |gt_j - mean_j|^2 -----------
    mr = mean[:, :, 0:1]
    mc = mean[:, :, 1:2]
    pos = jnp.sum(((cr - mr) ** 2 + (cc - mc) ** 2) * vis)

    # ---- weighted pairwise distance discrepancy (wpdd) ---------------------
    # "broadcast along j" without MXU or transpose: eye mask + sublane reduce.
    eye = (lax.broadcasted_iota(jnp.int32, (C, C), 0)
           == lax.broadcasted_iota(jnp.int32, (C, C), 1)).astype(jnp.float32)
    cr_j = jnp.sum(cr * eye, axis=1, keepdims=True)              # (TB, 1, C)
    cc_j = jnp.sum(cc * eye, axis=1, keepdims=True)              # (TB, 1, C)
    dr = cr - cr_j                                               # (TB, C, C)
    dc = cc - cc_j
    dgt = jnp.sqrt(dr * dr + dc * dc)
    wpdd = jnp.sum(wpair * (dgt - dpd) ** 2)   # wpair = vis_i*vis_j*alpha^(j-i), j>i

    # ---- lane-padded partial-sum row [sa, pos, wpdd, 0, ...] ----------------
    lane = lax.broadcasted_iota(jnp.int32, (1, 128), 1)
    out_ref[...] = (jnp.where(lane == 0, sa, 0.0)
                    + jnp.where(lane == 1, pos, 0.0)
                    + jnp.where(lane == 2, wpdd, 0.0))


# ----------------------------- wrapper ----------------------------------------
def _choose_batch_tile(B, C, HW, pred_itemsize, tgt_itemsize):
    """Pick the batch-tile size and vmem limit from the actual VMEM capacity."""
    try:
        info = pltpu.get_tpu_info()
        vmem = int(getattr(info, "vmem_capacity_bytes", 64 << 20))
    except Exception:
        vmem = 64 << 20                                  # conservative (v7x-safe)
    vmem_limit = int(min((vmem * 3) // 4, 100 << 20))
    per_sample = C * HW * (pred_itemsize + tgt_itemsize)     # pred + target tiles
    per_sample += C * (1 + 2 + 2 * C) * 4                    # vis / mean / dpd / wpair
    budget = (vmem_limit * 3) // 10                          # leaves room for 2x pipeline
    tb = max(1, min(B, budget // max(per_sample, 1)))
    nb = -(-B // tb)
    tb = -(-B // nb)                                         # balance -> minimal padding
    return int(tb), int(nb), vmem_limit


def _stack_losses(outputs, target, means, vis, *, wpdd_alpha=0.8):
    """Per-stack unscaled (sa, sk) losses, one fused pallas_call for all stacks."""
    S = len(outputs)
    B, C, H, W = target.shape
    HW = H * W

    # Heatmaps stay in native dtype (bf16 stays bf16) -> half the DMA traffic.
    pred = jnp.stack([o.reshape(B, C, HW) for o in outputs], axis=0)     # (S,B,C,HW)
    tgt = target.reshape(B, C, HW)                                       # (B,C,HW)
    vis3 = vis.reshape(B, C, 1).astype(jnp.float32)
    mean = jnp.stack([m.reshape(B, C, 2) for m in means],
                     axis=0).astype(jnp.float32)                         # (S,B,C,2)

    # --- tiny (C,C)-sized precomputations done once in plain XLA -------------
    d = mean[:, :, :, None, :] - mean[:, :, None, :, :]                  # (S,B,C,C,2)
    dpd = jnp.sqrt(jnp.sum(d * d, axis=-1))                              # (S,B,C,C)
    j1 = jnp.arange(C)[:, None]
    j2 = jnp.arange(C)[None, :]
    aw = jnp.where(j2 > j1,
                   wpdd_alpha ** jnp.maximum(j2 - j1, 0).astype(jnp.float32),
                   0.0).astype(jnp.float32)                              # (C,C)
    wpair = vis3[:, :, 0][:, :, None] * vis3[:, :, 0][:, None, :] * aw   # (B,C,C)

    idx = jnp.arange(HW, dtype=jnp.int32)
    rowp = ((idx // W).astype(jnp.float32) / float(H)).reshape(1, 1, HW)
    colp = ((idx % W).astype(jnp.float32) / float(W)).reshape(1, 1, HW)

    TB, NB, vmem_limit = _choose_batch_tile(
        B, C, HW, jnp.dtype(pred.dtype).itemsize, jnp.dtype(tgt.dtype).itemsize)
    Bp = NB * TB
    if Bp != B:
        padb = Bp - B            # zero-padded samples contribute 0 to every sum
        pred = jnp.pad(pred, ((0, 0), (0, padb), (0, 0), (0, 0)))
        tgt = jnp.pad(tgt, ((0, padb), (0, 0), (0, 0)))
        vis3 = jnp.pad(vis3, ((0, padb), (0, 0), (0, 0)))
        mean = jnp.pad(mean, ((0, 0), (0, padb), (0, 0), (0, 0)))
        dpd = jnp.pad(dpd, ((0, 0), (0, padb), (0, 0), (0, 0)))
        wpair = jnp.pad(wpair, ((0, padb), (0, 0), (0, 0)))

    partials = pl.pallas_call(
        _loss_kernel,
        out_shape=jax.ShapeDtypeStruct((NB, S, 1, 128), jnp.float32),
        grid=(NB, S),
        in_specs=[
            pl.BlockSpec((None, TB, C, HW), lambda bb, s: (s, bb, 0, 0)),  # pred
            pl.BlockSpec((TB, C, HW), lambda bb, s: (bb, 0, 0)),           # target
            pl.BlockSpec((TB, C, 1), lambda bb, s: (bb, 0, 0)),            # vis
            pl.BlockSpec((None, TB, C, 2), lambda bb, s: (s, bb, 0, 0)),   # mean_js
            pl.BlockSpec((None, TB, C, C), lambda bb, s: (s, bb, 0, 0)),   # dpd
            pl.BlockSpec((TB, C, C), lambda bb, s: (bb, 0, 0)),            # pair wts
            pl.BlockSpec((1, 1, HW), lambda bb, s: (0, 0, 0)),             # row / H
            pl.BlockSpec((1, 1, HW), lambda bb, s: (0, 0, 0)),             # col / W
        ],
        out_specs=pl.BlockSpec((None, None, 1, 128),
                               lambda bb, s: (bb, s, 0, 0)),
        compiler_params=pltpu.CompilerParams(
            dimension_semantics=("parallel", "parallel"),
            vmem_limit_bytes=vmem_limit),
    )(pred, tgt, vis3, mean, dpd, wpair, rowp, colp)

    sa_sum = jnp.sum(partials[:, :, 0, 0], axis=0)        # (S,)
    pos_sum = jnp.sum(partials[:, :, 0, 1], axis=0)       # (S,)
    wpdd_sum = jnp.sum(partials[:, :, 0, 2], axis=0)      # (S,)

    # JointsMSELoss: (1/C) * sum_c 0.5 * mean_{b,hw}((vis*(p-g))^2)
    sa_loss = 0.5 * sa_sum / float(C * B * HW)
    sk_loss = 0.75 * pos_sum / float(B * C * 2) + 0.25 * wpdd_sum / float(B)
    return sa_loss, sk_loss


class Loss:
    """JAX/Pallas equivalent of the PyTorch Loss module (forward pass only)."""

    def __init__(self, stack_ri=0.8, ips=True, ips_lc=0.05, wpdd_alpha=0.8):
        self.stack_ri = stack_ri
        self.ips = ips
        self.ips_lc = ips_lc
        self.wpdd_alpha = wpdd_alpha

    def __call__(self, output, target, sgi, vis, X):
        # sgi = (satt, mean_js, var_js, vis_js) or a list of such tuples.
        if isinstance(output, list) and isinstance(sgi, list):
            outputs = list(output[::-1])
            means = [s[1] for s in sgi[::-1]]
            coeffs = jnp.asarray([self.stack_ri ** i for i in range(len(outputs))],
                                 jnp.float32)
        else:
            outputs = [output]
            means = [sgi[1]]
            coeffs = jnp.asarray([1.0], jnp.float32)

        sa_s, sk_s = _stack_losses(outputs, target, means, vis,
                                   wpdd_alpha=self.wpdd_alpha)
        denom = jnp.sum(coeffs)
        sa_loss = jnp.sum(sa_s * coeffs) / denom * 50000.0
        sk_loss = jnp.sum(sk_s * coeffs) / denom * 10.0
        if self.ips:
            loss = (1.0 - self.ips_lc) * sa_loss + self.ips_lc * sk_loss
        else:
            loss = sa_loss
        # NOTE: joints_loss_var = |mean(var_js) - 1| is computed but never used
        #       in the original loss; it is intentionally omitted here.
        # TODO(synk): visualize_training_process (random-gated image file I/O)
        #             has no Pallas equivalent; skipped.
        return loss, {"sa": sa_loss, "sk": sk_loss}


# --------------------------- pure-JAX reference ------------------------------
def _reference_stack(output, target, mean_js, vis, alpha=0.8):
    B, C, H, W = target.shape
    p = output.reshape(B, C, -1).astype(jnp.float32)
    g = target.reshape(B, C, -1).astype(jnp.float32)
    v = vis.reshape(B, C, 1).astype(jnp.float32)

    sa = 0.0
    for c in range(C):
        sa += 0.5 * jnp.mean((v[:, c] * (p[:, c] - g[:, c])) ** 2)
    sa = sa / C

    mask = (target > 0).astype(jnp.float32)
    rr = jnp.arange(H, dtype=jnp.float32)[None, None, :, None]
    cc = jnp.arange(W, dtype=jnp.float32)[None, None, None, :]
    cnt = mask.sum((2, 3))
    rm = jnp.where(cnt > 0, (mask * rr).sum((2, 3)) / jnp.maximum(cnt, 1), 0.) / H
    cm = jnp.where(cnt > 0, (mask * cc).sum((2, 3)) / jnp.maximum(cnt, 1), 0.) / W
    gt_j = jnp.stack([rm, cm], -1)

    pos = jnp.mean(jnp.abs(gt_j - mean_js) ** 2 * v)
    wpdd = 0.0
    for b in range(B):
        wb = 0.0
        for a in range(C - 1):
            for b2 in range(a + 1, C):
                if float(v[b, a, 0]) and float(v[b, b2, 0]):
                    gd = jnp.linalg.norm(gt_j[b, a] - gt_j[b, b2])
                    pd = jnp.linalg.norm(mean_js[b, a] - mean_js[b, b2])
                    wb += (gd - pd) ** 2 * alpha ** (b2 - a)
        wpdd += wb / B
    sk = 0.75 * pos + 0.25 * wpdd
    return sa, sk


def _reference_loss(output, target, sgi, vis, stack_ri=0.8, ips_lc=0.05):
    if isinstance(output, list):
        sa_l, sk_l, sc = 0.0, 0.0, 0.0
        for i, (o, s) in enumerate(zip(output[::-1], sgi[::-1])):
            c = stack_ri ** i
            sc += c
            sa, sk = _reference_stack(o, target, s[1], vis)
            sa_l += sa * c
            sk_l += sk * c
        sa_l, sk_l = sa_l / sc, sk_l / sc
    else:
        sa_l, sk_l = _reference_stack(output, target, sgi[1], vis)
    sa_l = sa_l * 50000.0
    sk_l = sk_l * 10.0
    return (1 - ips_lc) * sa_l + ips_lc * sk_l, sa_l, sk_l


if __name__ == "__main__":
    key = jax.random.PRNGKey(0)
    k1, k2, k3, k4, k5, k6, k7 = jax.random.split(key, 7)
    B, C, H, W = 2, 4, 16, 16

    # Synthetic gaussian-blob target heatmaps (NCHW).
    ctr_r = jax.random.uniform(k1, (B, C), minval=4.0, maxval=12.0)
    ctr_c = jax.random.uniform(k2, (B, C), minval=4.0, maxval=12.0)
    rr = jnp.arange(H, dtype=jnp.float32)[None, None, :, None]
    cc = jnp.arange(W, dtype=jnp.float32)[None, None, None, :]
    gauss = jnp.exp(-(((rr - ctr_r[..., None, None]) ** 2
                       + (cc - ctr_c[..., None, None]) ** 2) / (2 * 1.5 ** 2)))
    target = jnp.where(gauss > 0.05, gauss, 0.0).astype(jnp.float32)
    target = target.at[1, 3].set(0.0)                 # empty heatmap branch

    output = (target + 0.05 * jax.random.normal(k3, target.shape)).astype(jnp.float32)
    output2 = (target + 0.08 * jax.random.normal(k6, target.shape)).astype(jnp.float32)

    vis = jnp.ones((B, C, 1), jnp.float32)
    vis = vis.at[1, 3, 0].set(0.0).at[0, 1, 0].set(0.0)

    mean_js = (jnp.stack([ctr_r / H, ctr_c / W], axis=-1)
               + 0.02 * jax.random.normal(k4, (B, C, 2))).astype(jnp.float32)
    mean_js2 = (jnp.stack([ctr_r / H, ctr_c / W], axis=-1)
                + 0.03 * jax.random.normal(k7, (B, C, 2))).astype(jnp.float32)
    var_js = jnp.ones((B, C, 2), jnp.float32) * 1.1
    satt = jnp.zeros((B, C, H, W), jnp.float32)
    sgi1 = (satt, mean_js, var_js, vis)
    sgi2 = (satt, mean_js2, var_js, vis)

    X = jax.random.normal(k5, (B, 3, H * 4, W * 4), jnp.float32)

    loss_fn = Loss()

    # --- single-stack path ---------------------------------------------------
    loss, infos = loss_fn(output, target, sgi1, vis, X)
    loss = jax.block_until_ready(loss)
    ref_loss, ref_sa, ref_sk = _reference_loss(output, target, sgi1, vis)
    assert jnp.allclose(loss, ref_loss, rtol=1e-3, atol=1e-4), (loss, ref_loss)
    assert jnp.allclose(infos["sa"], ref_sa, rtol=1e-3, atol=1e-4)
    assert jnp.allclose(infos["sk"], ref_sk, rtol=1e-3, atol=1e-4)

    # --- multi-stack (list) path: one fused pallas_call over both stacks -----
    loss_m, infos_m = loss_fn([output, output2], target, [sgi1, sgi2], vis, X)
    loss_m = jax.block_until_ready(loss_m)
    ref_lm, ref_sam, ref_skm = _reference_loss([output, output2], target,
                                               [sgi1, sgi2], vis)
    assert jnp.allclose(loss_m, ref_lm, rtol=1e-3, atol=1e-4), (loss_m, ref_lm)
    assert jnp.allclose(infos_m["sa"], ref_sam, rtol=1e-3, atol=1e-4)
    assert jnp.allclose(infos_m["sk"], ref_skm, rtol=1e-3, atol=1e-4)

    print("KERNEL_OK")
</pallas_src>

<mosaic_0001>
module attributes {stable_mosaic.version = 11 : i64} {
  func.func @_loss_kernel(%arg0: i32, %arg1: i32, %arg2: memref<1x2x4x256xf32, #tpu.memory_space<vmem>>, %arg3: memref<2x4x256xf32, #tpu.memory_space<vmem>>, %arg4: memref<2x4x1xf32, #tpu.memory_space<vmem>>, %arg5: memref<1x2x4x2xf32, #tpu.memory_space<vmem>>, %arg6: memref<1x2x4x4xf32, #tpu.memory_space<vmem>>, %arg7: memref<2x4x4xf32, #tpu.memory_space<vmem>>, %arg8: memref<1x1x256xf32, #tpu.memory_space<vmem>>, %arg9: memref<1x1x256xf32, #tpu.memory_space<vmem>>, %arg10: memref<1x1x1x128xf32, #tpu.memory_space<vmem>>) attributes {dimension_semantics = [#tpu.dimension_semantics<parallel>, #tpu.dimension_semantics<parallel>], iteration_bounds = array<i64: 1, 1>, scalar_prefetch = 0 : i64, scratch_operands = 0 : i64, tpu.core_type = #tpu.core_type<tc>, window_params = [{transform_indices = @transform_0, window_bounds = array<i64: 1, 2, 4, 256>}, {transform_indices = @transform_1, window_bounds = array<i64: 2, 4, 256>}, {transform_indices = @transform_2, window_bounds = array<i64: 2, 4, 1>}, {transform_indices = @transform_3, window_bounds = array<i64: 1, 2, 4, 2>}, {transform_indices = @transform_4, window_bounds = array<i64: 1, 2, 4, 4>}, {transform_indices = @transform_5, window_bounds = array<i64: 2, 4, 4>}, {pipeline_mode = #tpu.pipeline_mode<synchronous>, transform_indices = @transform_6, window_bounds = array<i64: 1, 1, 256>}, {pipeline_mode = #tpu.pipeline_mode<synchronous>, transform_indices = @transform_7, window_bounds = array<i64: 1, 1, 256>}, {transform_indices = @transform_8, window_bounds = array<i64: 1, 1, 1, 128>}]} {
    %c0 = arith.constant 0 : index
    %c0_0 = arith.constant 0 : index
    %c0_1 = arith.constant 0 : index
    %c0_2 = arith.constant 0 : index
    %0 = vector.load %arg2[%c0, %c0_0, %c0_1, %c0_2] : memref<1x2x4x256xf32, #tpu.memory_space<vmem>>, vector<1x2x4x256xf32>
    %1 = vector.shape_cast %0 : vector<1x2x4x256xf32> to vector<2x4x256xf32>
    %c0_3 = arith.constant 0 : index
    %c0_4 = arith.constant 0 : index
    %c0_5 = arith.constant 0 : index
    %2 = vector.load %arg3[%c0_3, %c0_4, %c0_5] : memref<2x4x256xf32, #tpu.memory_space<vmem>>, vector<2x4x256xf32>
    %c0_6 = arith.constant 0 : index
    %c0_7 = arith.constant 0 : index
    %c0_8 = arith.constant 0 : index
    %3 = vector.load %arg4[%c0_6, %c0_7, %c0_8] : memref<2x4x1xf32, #tpu.memory_space<vmem>>, vector<2x4x1xf32>
    %c0_9 = arith.constant 0 : index
    %c0_10 = arith.constant 0 : index
    %c0_11 = arith.constant 0 : index
    %c0_12 = arith.constant 0 : index
    %4 = vector.load %arg5[%c0_9, %c0_10, %c0_11, %c0_12] : memref<1x2x4x2xf32, #tpu.memory_space<vmem>>, vector<1x2x4x2xf32>
    %5 = vector.shape_cast %4 : vector<1x2x4x2xf32> to vector<2x4x2xf32>
    %c0_13 = arith.constant 0 : index
    %c0_14 = arith.constant 0 : index
    %c0_15 = arith.constant 0 : index
    %c0_16 = arith.constant 0 : index
    %6 = vector.load %arg6[%c0_13, %c0_14, %c0_15, %c0_16] : memref<1x2x4x4xf32, #tpu.memory_space<vmem>>, vector<1x2x4x4xf32>
    %7 = vector.shape_cast %6 : vector<1x2x4x4xf32> to vector<2x4x4xf32>
    %c0_17 = arith.constant 0 : index
    %c0_18 = arith.constant 0 : index
    %c0_19 = arith.constant 0 : index
    %8 = vector.load %arg7[%c0_17, %c0_18, %c0_19] : memref<2x4x4xf32, #tpu.memory_space<vmem>>, vector<2x4x4xf32>
    %c0_20 = arith.constant 0 : index
    %c0_21 = arith.constant 0 : index
    %c0_22 = arith.constant 0 : index
    %9 = vector.load %arg8[%c0_20, %c0_21, %c0_22] : memref<1x1x256xf32, #tpu.memory_space<vmem>>, vector<1x1x256xf32>
    %c0_23 = arith.constant 0 : index
    %c0_24 = arith.constant 0 : index
    %c0_25 = arith.constant 0 : index
    %10 = vector.load %arg9[%c0_23, %c0_24, %c0_25] : memref<1x1x256xf32, #tpu.memory_space<vmem>>, vector<1x1x256xf32>
    %11 = arith.subf %1, %2 : vector<2x4x256xf32>
    %12 = vector.broadcast %3 : vector<2x4x1xf32> to vector<2x4x256xf32>
    %13 = arith.mulf %11, %12 : vector<2x4x256xf32>
    %14 = arith.mulf %13, %13 : vector<2x4x256xf32>
    %15 = vector.shape_cast %14 : vector<2x4x256xf32> to vector<1x2x4x256xf32>
    %cst = arith.constant dense<0.000000e+00> : vector<1xf32>
    %16 = vector.multi_reduction <add>, %15, %cst [1, 2, 3] : vector<1x2x4x256xf32> to vector<1xf32>
    %17 = vector.shape_cast %16 : vector<1xf32> to vector<1x1x1x1xf32>
    %18 = vector.extract %17[0, 0, 0, 0] : f32 from vector<1x1x1x1xf32>
    %cst_26 = arith.constant 0.000000e+00 : f32
    %19 = vector.broadcast %cst_26 : f32 to vector<2x4x256xf32>
    %20 = arith.cmpf ogt, %2, %19 : vector<2x4x256xf32>
    %21 = arith.extui %20 : vector<2x4x256xi1> to vector<2x4x256xi32>
    %22 = arith.sitofp %21 : vector<2x4x256xi32> to vector<2x4x256xf32>
    %cst_27 = arith.constant dense<0.000000e+00> : vector<2x4xf32>
    %23 = vector.multi_reduction <add>, %22, %cst_27 [2] : vector<2x4x256xf32> to vector<2x4xf32>
    %24 = vector.shape_cast %23 : vector<2x4xf32> to vector<2x4x1xf32>
    %cst_28 = arith.constant 0.000000e+00 : f32
    %25 = vector.broadcast %cst_28 : f32 to vector<2x4x1xf32>
    %26 = arith.cmpf ogt, %24, %25 : vector<2x4x1xf32>
    %cst_29 = arith.constant 1.000000e+00 : f32
    %27 = vector.broadcast %cst_29 : f32 to vector<2x4x1xf32>
    %28 = arith.maximumf %24, %27 : vector<2x4x1xf32>
    %cst_30 = arith.constant 1.000000e+00 : f32
    %29 = vector.broadcast %cst_30 : f32 to vector<2x4x1xf32>
    %30 = arith.divf %29, %28 : vector<2x4x1xf32>
    %cst_31 = arith.constant 0.000000e+00 : f32
    %31 = vector.broadcast %cst_31 : f32 to vector<2x4x1xf32>
    %32 = arith.select %26, %30, %31 : vector<2x4x1xi1>, vector<2x4x1xf32>
    %33 = vector.broadcast %9 : vector<1x1x256xf32> to vector<2x4x256xf32>
    %34 = arith.mulf %22, %33 : vector<2x4x256xf32>
    %cst_32 = arith.constant dense<0.000000e+00> : vector<2x4xf32>
    %35 = vector.multi_reduction <add>, %34, %cst_32 [2] : vector<2x4x256xf32> to vector<2x4xf32>
    %36 = vector.shape_cast %35 : vector<2x4xf32> to vector<2x4x1xf32>
    %37 = arith.mulf %36, %32 : vector<2x4x1xf32>
    %38 = vector.broadcast %10 : vector<1x1x256xf32> to vector<2x4x256xf32>
    %39 = arith.mulf %22, %38 : vector<2x4x256xf32>
    %cst_33 = arith.constant dense<0.000000e+00> : vector<2x4xf32>
    %40 = vector.multi_reduction <add>, %39, %cst_33 [2] : vector<2x4x256xf32> to vector<2x4xf32>
    %41 = vector.shape_cast %40 : vector<2x4xf32> to vector<2x4x1xf32>
    %42 = arith.mulf %41, %32 : vector<2x4x1xf32>
    %43 = vector.extract_strided_slice %5 {offsets = [0, 0, 0], sizes = [2, 4, 1], strides = [1, 1, 1]} : vector<2x4x2xf32> to vector<2x4x1xf32>
    %44 = vector.extract_strided_slice %5 {offsets = [0, 0, 1], sizes = [2, 4, 1], strides = [1, 1, 1]} : vector<2x4x2xf32> to vector<2x4x1xf32>
    %45 = arith.subf %37, %43 : vector<2x4x1xf32>
    %46 = arith.mulf %45, %45 : vector<2x4x1xf32>
    %47 = arith.subf %42, %44 : vector<2x4x1xf32>
    %48 = arith.mulf %47, %47 : vector<2x4x1xf32>
    %49 = arith.addf %46, %48 : vector<2x4x1xf32>
    %50 = arith.mulf %49, %3 : vector<2x4x1xf32>
    %51 = vector.shape_cast %50 : vector<2x4x1xf32> to vector<1x2x4x1xf32>
    %cst_34 = arith.constant dense<0.000000e+00> : vector<1xf32>
    %52 = vector.multi_reduction <add>, %51, %cst_34 [1, 2, 3] : vector<1x2x4x1xf32> to vector<1xf32>
    %53 = vector.shape_cast %52 : vector<1xf32> to vector<1x1x1x1xf32>
    %54 = vector.extract %53[0, 0, 0, 0] : f32 from vector<1x1x1x1xf32>
    %55 = tpu.iota {dimensions = array<i32: 0>} : vector<4x4xi32>
    %56 = tpu.iota {dimensions = array<i32: 1>} : vector<4x4xi32>
    %57 = arith.cmpi eq, %55, %56 : vector<4x4xi32>
    %58 = arith.extui %57 : vector<4x4xi1> to vector<4x4xi32>
    %59 = arith.sitofp %58 : vector<4x4xi32> to vector<4x4xf32>
    %60 = vector.shape_cast %59 : vector<4x4xf32> to vector<1x4x4xf32>
    %61 = vector.broadcast %37 : vector<2x4x1xf32> to vector<2x4x4xf32>
    %62 = vector.broadcast %60 : vector<1x4x4xf32> to vector<2x4x4xf32>
    %63 = arith.mulf %61, %62 : vector<2x4x4xf32>
    %cst_35 = arith.constant dense<0.000000e+00> : vector<2x4xf32>
    %64 = vector.multi_reduction <add>, %63, %cst_35 [1] : vector<2x4x4xf32> to vector<2x4xf32>
    %65 = vector.shape_cast %64 : vector<2x4xf32> to vector<2x1x4xf32>
    %66 = vector.shape_cast %59 : vector<4x4xf32> to vector<1x4x4xf32>
    %67 = vector.broadcast %42 : vector<2x4x1xf32> to vector<2x4x4xf32>
    %68 = vector.broadcast %66 : vector<1x4x4xf32> to vector<2x4x4xf32>
    %69 = arith.mulf %67, %68 : vector<2x4x4xf32>
    %cst_36 = arith.constant dense<0.000000e+00> : vector<2x4xf32>
    %70 = vector.multi_reduction <add>, %69, %cst_36 [1] : vector<2x4x4xf32> to vector<2x4xf32>
    %71 = vector.shape_cast %70 : vector<2x4xf32> to vector<2x1x4xf32>
    %72 = vector.broadcast %37 : vector<2x4x1xf32> to vector<2x4x4xf32>
    %73 = vector.broadcast %65 : vector<2x1x4xf32> to vector<2x4x4xf32>
    %74 = arith.subf %72, %73 : vector<2x4x4xf32>
    %75 = vector.broadcast %42 : vector<2x4x1xf32> to vector<2x4x4xf32>
    %76 = vector.broadcast %71 : vector<2x1x4xf32> to vector<2x4x4xf32>
    %77 = arith.subf %75, %76 : vector<2x4x4xf32>
    %78 = arith.mulf %74, %74 : vector<2x4x4xf32>
    %79 = arith.mulf %77, %77 : vector<2x4x4xf32>
    %80 = arith.addf %78, %79 : vector<2x4x4xf32>
    %81 = math.sqrt %80 : vector<2x4x4xf32>
    %82 = arith.subf %81, %7 : vector<2x4x4xf32>
    %83 = arith.mulf %82, %82 : vector<2x4x4xf32>
    %84 = arith.mulf %8, %83 : vector<2x4x4xf32>
    %85 = vector.shape_cast %84 : vector<2x4x4xf32> to vector<1x2x4x4xf32>
    %cst_37 = arith.constant dense<0.000000e+00> : vector<1xf32>
    %86 = vector.multi_reduction <add>, %85, %cst_37 [1, 2, 3] : vector<1x2x4x4xf32> to vector<1xf32>
    %87 = vector.shape_cast %86 : vector<1xf32> to vector<1x1x1x1xf32>
    %88 = vector.extract %87[0, 0, 0, 0] : f32 from vector<1x1x1x1xf32>
    %89 = tpu.iota {dimensions = array<i32: 1>} : vector<1x128xi32>
    %c0_i32 = arith.constant 0 : i32
    %90 = vector.broadcast %c0_i32 : i32 to vector<1x128xi32>
    %91 = arith.cmpi eq, %89, %90 : vector<1x128xi32>
    %cst_38 = arith.constant 0.000000e+00 : f32
    %92 = vector.broadcast %18 : f32 to vector<1x128xf32>
    %93 = vector.broadcast %cst_38 : f32 to vector<1x128xf32>
    %94 = arith.select %91, %92, %93 : vector<1x128xi1>, vector<1x128xf32>
    %c1_i32 = arith.constant 1 : i32
    %95 = vector.broadcast %c1_i32 : i32 to vector<1x128xi32>
    %96 = arith.cmpi eq, %89, %95 : vector<1x128xi32>
    %cst_39 = arith.constant 0.000000e+00 : f32
    %97 = vector.broadcast %54 : f32 to vector<1x128xf32>
    %98 = vector.broadcast %cst_39 : f32 to vector<1x128xf32>
    %99 = arith.select %96, %97, %98 : vector<1x128xi1>, vector<1x128xf32>
    %100 = arith.addf %94, %99 : vector<1x128xf32>
    %c2_i32 = arith.constant 2 : i32
    %101 = vector.broadcast %c2_i32 : i32 to vector<1x128xi32>
    %102 = arith.cmpi eq, %89, %101 : vector<1x128xi32>
    %cst_40 = arith.constant 0.000000e+00 : f32
    %103 = vector.broadcast %88 : f32 to vector<1x128xf32>
    %104 = vector.broadcast %cst_40 : f32 to vector<1x128xf32>
    %105 = arith.select %102, %103, %104 : vector<1x128xi1>, vector<1x128xf32>
    %106 = arith.addf %100, %105 : vector<1x128xf32>
    %c0_41 = arith.constant 0 : index
    %c0_42 = arith.constant 0 : index
    %c0_43 = arith.constant 0 : index
    %c0_44 = arith.constant 0 : index
    %107 = vector.load %arg10[%c0_41, %c0_42, %c0_43, %c0_44] : memref<1x1x1x128xf32, #tpu.memory_space<vmem>>, vector<1x1x1x128xf32>
    %108 = vector.shape_cast %107 : vector<1x1x1x128xf32> to vector<1x128xf32>
    %109 = vector.shape_cast %106 : vector<1x128xf32> to vector<1x1x1x128xf32>
    tpu.vector_store %arg10[%c0_41, %c0_42, %c0_43, %c0_44], %109 {strides = array<i32>} : memref<1x1x1x128xf32, #tpu.memory_space<vmem>>, vector<1x1x1x128xf32>,
    return
  }
  func.func @transform_0(%arg0: i32, %arg1: i32) -> (i32, i32, i32, i32) {
    %c0_i32 = arith.constant 0 : i32
    %c0_i32_0 = arith.constant 0 : i32
    %c0_i32_1 = arith.constant 0 : i32
    return %arg1, %arg0, %c0_i32, %c0_i32_0 : i32, i32, i32, i32
  }
  func.func @transform_1(%arg0: i32, %arg1: i32) -> (i32, i32, i32) {
    %c0_i32 = arith.constant 0 : i32
    %c0_i32_0 = arith.constant 0 : i32
    %c0_i32_1 = arith.constant 0 : i32
    return %arg0, %c0_i32, %c0_i32_0 : i32, i32, i32
  }
  func.func @transform_2(%arg0: i32, %arg1: i32) -> (i32, i32, i32) {
    %c0_i32 = arith.constant 0 : i32
    %c0_i32_0 = arith.constant 0 : i32
    %c0_i32_1 = arith.constant 0 : i32
    return %arg0, %c0_i32, %c0_i32_0 : i32, i32, i32
  }
  func.func @transform_3(%arg0: i32, %arg1: i32) -> (i32, i32, i32, i32) {
    %c0_i32 = arith.constant 0 : i32
    %c0_i32_0 = arith.constant 0 : i32
    %c0_i32_1 = arith.constant 0 : i32
    return %arg1, %arg0, %c0_i32, %c0_i32_0 : i32, i32, i32, i32
  }
  func.func @transform_4(%arg0: i32, %arg1: i32) -> (i32, i32, i32, i32) {
    %c0_i32 = arith.constant 0 : i32
    %c0_i32_0 = arith.constant 0 : i32
    %c0_i32_1 = arith.constant 0 : i32
    return %arg1, %arg0, %c0_i32, %c0_i32_0 : i32, i32, i32, i32
  }
  func.func @transform_5(%arg0: i32, %arg1: i32) -> (i32, i32, i32) {
    %c0_i32 = arith.constant 0 : i32
    %c0_i32_0 = arith.constant 0 : i32
    %c0_i32_1 = arith.constant 0 : i32
    return %arg0, %c0_i32, %c0_i32_0 : i32, i32, i32
  }
  func.func @transform_6(%arg0: i32, %arg1: i32) -> (i32, i32, i32) {
    %c0_i32 = arith.constant 0 : i32
    %c0_i32_0 = arith.constant 0 : i32
    %c0_i32_1 = arith.constant 0 : i32
    %c0_i32_2 = arith.constant 0 : i32
    return %c0_i32, %c0_i32_0, %c0_i32_1 : i32, i32, i32
  }
  func.func @transform_7(%arg0: i32, %arg1: i32) -> (i32, i32, i32) {
    %c0_i32 = arith.constant 0 : i32
    %c0_i32_0 = arith.constant 0 : i32
    %c0_i32_1 = arith.constant 0 : i32
    %c0_i32_2 = arith.constant 0 : i32
    return %c0_i32, %c0_i32_0, %c0_i32_1 : i32, i32, i32
  }
  func.func @transform_8(%arg0: i32, %arg1: i32) -> (i32, i32, i32, i32) {
    %c0_i32 = arith.constant 0 : i32
    %c0_i32_0 = arith.constant 0 : i32
    %c0_i32_1 = arith.constant 0 : i32
    return %arg0, %arg1, %c0_i32, %c0_i32_0 : i32, i32, i32, i32
  }
}

</mosaic_0001>

<llo_original>
// kernel: tpu_custom_call.1
$region0: #{tpu_custom_call.1}
  #allocation0 [shape = 'u32[]', space=smem, size = 0x4, offset = 0x4, fixed_abs, tag = 'smem constant byte address 0x4 - core index']
  #allocation1 [shape = 'u32[144,128]{1,0:T(1,128)}', space=vmem, size = 0x12000, scoped, tag = 'internal scratch']
  %s0 = inlined_call_operand.vmem [shape: f32[1,2,4,256], index: 0, kind: input, shape index: {}]
  %s1 = inlined_call_operand.hbm [shape: f32[2,4,256], index: 1, kind: input, shape index: {}]
  %s2 = inlined_call_operand.vmem [shape: f32[2,4,1], index: 2, kind: input, shape index: {}]
  %s3 = inlined_call_operand.vmem [shape: f32[1,2,4,2], index: 3, kind: input, shape index: {}]
  %s4 = inlined_call_operand.vmem [shape: f32[1,2,4,4], index: 4, kind: input, shape index: {}]
  %s5 = inlined_call_operand.vmem [shape: f32[2,4,4], index: 5, kind: input, shape index: {}]
  %s6 = inlined_call_operand.vmem [shape: f32[1,1,256], index: 6, kind: input, shape index: {}]
  %s7 = inlined_call_operand.vmem [shape: f32[1,1,256], index: 7, kind: input, shape index: {}]
  %s8 = inlined_call_operand.hbm [shape: f32[1,1,1,128], index: 8, kind: output, shape index: {}]
  %s9 = sld [smem:[#allocation0]]
  $region46: #{tpu_custom_call.1} parent=0
    _
  %s11 = ssub.s32 1, %s9
  %s12 = scalar_select 0, %s11, %s9
  $region1: #{tpu_custom_call.1} parent=0
    #allocation2 [shape = 'u8[8192]{0}', space=vmem, size = 0x2000, scoped, tag = 'input window, operand 1, single buffered']
    #allocation3 [shape = 's32[1]{0}', space=sflag, size = 0x4, scoped, tag = 'scoped memory for tpu_custom_call.1']
    #allocation4 [shape = 's32[1]{0}', space=sflag, size = 0x4, scoped, tag = 'scoped memory for tpu_custom_call.1']
    #allocation5 [shape = 'u8[512]{0}', space=vmem, size = 0x400, scoped, tag = 'output window, operand 0, single buffered']
    %13 = vsyncpa [#allocation3], 0
    %14 = vsyncpa [#allocation4], 0
    // Predicated region
    $region2: #{tpu_custom_call.1} parent=1 // pred_check
      _
    $region3: #{tpu_custom_call.1} parent=1 // pred_check_branch
      %16 = sbr.rel (0) target = $region5
    $region4: #{tpu_custom_call.1} parent=1 // pred_region
      _
    $region5: #{tpu_custom_call.1} parent=1 // pred_fallthru
      _
    // Predicated region
    $region6: #{tpu_custom_call.1} parent=1 // pred_check
      _
    $region7: #{tpu_custom_call.1} parent=1 // pred_check_branch
      %18 = sbr.rel (0) target = $region9
    $region8: #{tpu_custom_call.1} parent=1 // pred_region
      %s20 = ssub.s32 256, 256
      %21 = vsyncadd [#allocation3], %s20
      %s22 = sshll.u32 [#allocation2], 4
      %s23 = int_to_ptr.vmem [resolvable:$true] %s22
      %28 = dma.hbm_to_vmem [thread:$0]  %s1, 256, %s23, [#allocation3], 128, 128, 8
    $region9: #{tpu_custom_call.1} parent=1 // pred_fallthru
      _
    // Predicated region
    $region10: #{tpu_custom_call.1} parent=1 // pred_check
      _
    $region11: #{tpu_custom_call.1} parent=1 // pred_check_branch
      %30 = sbr.rel (0) target = $region13
    $region12: #{tpu_custom_call.1} parent=1 // pred_region
      _
    $region13: #{tpu_custom_call.1} parent=1 // pred_fallthru
      _
    // Predicated region
    $region14: #{tpu_custom_call.1} parent=1 // pred_check
      _
    $region15: #{tpu_custom_call.1} parent=1 // pred_check_branch
      %32 = sbr.rel (0) target = $region17
    $region16: #{tpu_custom_call.1} parent=1 // pred_region
      _
    $region17: #{tpu_custom_call.1} parent=1 // pred_fallthru
      _
    // Predicated region
    $region18: #{tpu_custom_call.1} parent=1 // pred_check
      _
    $region19: #{tpu_custom_call.1} parent=1 // pred_check_branch
      %34 = sbr.rel (0) target = $region21
    $region20: #{tpu_custom_call.1} parent=1 // pred_region
      _
    $region21: #{tpu_custom_call.1} parent=1 // pred_fallthru
      _
    // Predicated region
    $region22: #{tpu_custom_call.1} parent=1 // pred_check
      _
    $region23: #{tpu_custom_call.1} parent=1 // pred_check_branch
      %36 = sbr.rel (0) target = $region25
    $region24: #{tpu_custom_call.1} parent=1 // pred_region
      _
    $region25: #{tpu_custom_call.1} parent=1 // pred_fallthru
      _
    // Predicated region
    $region26: #{tpu_custom_call.1} parent=1 // pred_check
      _
    $region27: #{tpu_custom_call.1} parent=1 // pred_check_branch
      %38 = sbr.rel (0) target = $region29
    $region28: #{tpu_custom_call.1} parent=1 // pred_region
      _
    $region29: #{tpu_custom_call.1} parent=1 // pred_fallthru
      _
    // Predicated region
    $region30: #{tpu_custom_call.1} parent=1 // pred_check
      _
    $region31: #{tpu_custom_call.1} parent=1 // pred_check_branch
      %40 = sbr.rel (0) target = $region33
    $region32: #{tpu_custom_call.1} parent=1 // pred_region
      _
    $region33: #{tpu_custom_call.1} parent=1 // pred_fallthru
      _
    // Predicated region
    $region34: #{tpu_custom_call.1} parent=1 // pred_check
      _
    $region35: #{tpu_custom_call.1} parent=1 // pred_check_branch
      %42 = sbr.rel (0) target = $region37
    $region36: #{tpu_custom_call.1} parent=1 // pred_region
      %43 = dma.done [#allocation3], 256
    $region37: #{tpu_custom_call.1} parent=1 // pred_fallthru
      _
    %v44 = vld [vmem:[%s0] sm:$0xff]
    %v45 = vld [vmem:[%s0 + $0x8] sm:$0xff]
    %v46 = vld [vmem:[#allocation2] sm:$0xff]
    %v47 = vld [vmem:[#allocation2 + $0x8] sm:$0xff]
    %v48 = vld [vmem:[%s2] sm:$0xf]
    %v49 = vld [vmem:[%s2 + $0x4] sm:$0xf]
    %v50 = vld [vmem:[%s3] sm:$0xf]
    %v51 = vld [vmem:[%s3 + $0x4] sm:$0xf]
    %v52 = vld [vmem:[%s4] sm:$0xf]
    %v53 = vld [vmem:[%s4 + $0x4] sm:$0xf]
    %v54 = vld [vmem:[%s5] sm:$0xf]
    %v55 = vld [vmem:[%s5 + $0x4] sm:$0xf]
    %v56 = vld [vmem:[%s6] sm:$0x3]
    %v57 = vld [vmem:[%s7] sm:$0x3]
    %v58 = vsub.f32 %v44, %v46
    %v59 = vsub.f32 %v45, %v47
    %61 = vset.pattern.permute.xlu0 0
    %62 = vperm.xlu0 %61, %v48
    %v63 = vpop.permute.xlu0 %62
    %65 = vset.pattern.permute.xlu0 0
    %66 = vperm.xlu0 %65, %v49
    %v67 = vpop.permute.xlu0 %66
    %v69 = vunpack.c.l.s4 839922192
    %v70 = vunpack.c.0.s8 %v69
    %v71 = vlaneseq
    %v72 = vshrl.u32 %v71, 7
    %v73 = vsub.s32 %v70, %v72
    %v74 = vrot.slane %v63, %v73
    %v76 = vunpack.c.l.s4 839922192
    %v77 = vunpack.c.0.s8 %v76
    %v78 = vlaneseq
    %v79 = vshrl.u32 %v78, 7
    %v80 = vsub.s32 %v77, %v79
    %v81 = vrot.slane %v67, %v80
    %v84 = vmul.f32 %v58, %v74
    %v85 = vmul.f32 %v59, %v81
    %v86 = vmul.f32 %v84, %v84
    %v87 = vmul.f32 %v85, %v85
    %v90 = vcombine.high %v86, %v86
    %v91 = vcombine.high %v87, %v87
    %vm94 = vcmask 1043456
    %v95 = vsel %vm94, %v86, 0.0
    %v96 = vsel %vm94, %v90, 0.0
    %v97 = vadd.f32 %v95, %v96
    %v98 = vsel %vm94, %v87, 0.0
    %v99 = vadd.f32 %v97, %v98
    %v100 = vsel %vm94, %v91, 0.0
    %v101 = vadd.f32 %v99, %v100
    %102 = vadd.xlane.f32.xlu0 %v101
    %v103 = vpop.xlane.xlu0 %102
    %v104 = vrot.slane %v103, 4
    %v105 = vadd.f32 %v103, %v104
    %v106 = vrot.slane %v105, 2
    %v107 = vadd.f32 %v105, %v106
    %v108 = vrot.slane %v107, 1
    %v109 = vadd.f32 %v107, %v108
    %s110 = vtos %v109
    %vm111 = vcmp.gt.f32.partialorder %v46, 0.0
    %vm112 = vcmp.gt.f32.partialorder %v47, 0.0
    %v113 = vsel %vm111, 1, 0
    %v114 = vsel %vm112, 1, 0
    %v115 = vcvt.s32.f32 %v113
    %v116 = vcvt.s32.f32 %v114
    %v119 = vcombine.high %v115, %v115
    %v120 = vcombine.high %v116, %v116
    %v123 = vsel %vm94, %v115, 0.0
    %v124 = vsel %vm94, %v119, 0.0
    %v125 = vadd.f32 %v123, %v124
    %126 = vadd.xlane.f32.xlu0 %v125
    %v127 = vpop.xlane.xlu0 %126
    %v128 = vsel %vm94, %v116, 0.0
    %v129 = vsel %vm94, %v120, 0.0
    %v130 = vadd.f32 %v128, %v129
    %131 = vadd.xlane.f32.xlu0 %v130
    %v132 = vpop.xlane.xlu0 %131
    %vm133 = vcmp.gt.f32.partialorder %v127, 0.0
    %vm134 = vcmp.gt.f32.partialorder %v132, 0.0
    %v135 = vmax.f32 %v127, 1.0
    %v136 = vmax.f32 %v132, 1.0
    %v137 = vrcp.pop %v135
    %v138 = vmul.f32 1.0, %v137
    %v139 = vrcp.pop %v136
    %v140 = vmul.f32 1.0, %v139
    %v141 = vsel %vm133, %v138, 0.0
    %v142 = vsel %vm134, %v140, 0.0
    %v144 = vlaneseq
    %v145 = vshrl.u32 %v144, 7
    %v146 = vsub.s32 0, %v145
    %v147 = vrot.slane %v56, %v146
    %v148 = vlaneseq
    %v149 = vshrl.u32 %v148, 7
    %v150 = vsub.s32 1, %v149
    %v151 = vrot.slane %v56, %v150
    %v152 = vcombine.low %v147, %v151
    %v154 = vmul.f32 %v115, %v152
    %v155 = vmul.f32 %v116, %v152
    %v158 = vcombine.high %v154, %v154
    %v159 = vcombine.high %v155, %v155
    %v162 = vsel %vm94, %v154, 0.0
    %v163 = vsel %vm94, %v158, 0.0
    %v164 = vadd.f32 %v162, %v163
    %165 = vadd.xlane.f32.xlu0 %v164
    %v166 = vpop.xlane.xlu0 %165
    %v167 = vsel %vm94, %v155, 0.0
    %v168 = vsel %vm94, %v159, 0.0
    %v169 = vadd.f32 %v167, %v168
    %170 = vadd.xlane.f32.xlu0 %v169
    %v171 = vpop.xlane.xlu0 %170
    %v172 = vmul.f32 %v166, %v141
    %v173 = vmul.f32 %v171, %v142
    %v175 = vlaneseq
    %v176 = vshrl.u32 %v175, 7
    %v177 = vsub.s32 0, %v176
    %v178 = vrot.slane %v57, %v177
    %v179 = vlaneseq
    %v180 = vshrl.u32 %v179, 7
    %v181 = vsub.s32 1, %v180
    %v182 = vrot.slane %v57, %v181
    %v183 = vcombine.low %v178, %v182
    %v185 = vmul.f32 %v115, %v183
    %v186 = vmul.f32 %v116, %v183
    %v189 = vcombine.high %v185, %v185
    %v190 = vcombine.high %v186, %v186
    %v193 = vsel %vm94, %v185, 0.0
    %v194 = vsel %vm94, %v189, 0.0
    %v195 = vadd.f32 %v193, %v194
    %196 = vadd.xlane.f32.xlu0 %v195
    %v197 = vpop.xlane.xlu0 %196
    %v198 = vsel %vm94, %v186, 0.0
    %v199 = vsel %vm94, %v190, 0.0
    %v200 = vadd.f32 %v198, %v199
    %201 = vadd.xlane.f32.xlu0 %v200
    %v202 = vpop.xlane.xlu0 %201
    %v203 = vmul.f32 %v197, %v141
    %v204 = vmul.f32 %v202, %v142
    %v205 = vsub.f32 %v172, %v50
    %v206 = vsub.f32 %v173, %v51
    %v207 = vmul.f32 %v205, %v205
    %v208 = vmul.f32 %v206, %v206
    %v209 = vsub.f32 %v203, %v50
    %v210 = vsub.f32 %v204, %v51
    %v211 = vmul.f32 %v209, %v209
    %v212 = vmul.f32 %v210, %v210
    %215 = vrot.lane.b32.xlu0 %v211, 127
    %v216 = vpop.permute.xlu0 %215
    %217 = vrot.lane.b32.xlu0 %v212, 127
    %v218 = vpop.permute.xlu0 %217
    %v221 = vadd.f32 %v207, %v216
    %v222 = vadd.f32 %v208, %v218
    %v223 = vmul.f32 %v221, %v48
    %v224 = vmul.f32 %v222, %v49
    %vm225 = vcmask 3072
    %v226 = vsel %vm225, %v223, 0.0
    %v227 = vsel %vm225, %v224, 0.0
    %v228 = vadd.f32 %v226, %v227
    %229 = vadd.xlane.f32.xlu0 %v228
    %v230 = vpop.xlane.xlu0 %229
    %v231 = vrot.slane %v230, 4
    %v232 = vadd.f32 %v230, %v231
    %v233 = vrot.slane %v232, 2
    %v234 = vadd.f32 %v232, %v233
    %v235 = vrot.slane %v234, 1
    %v236 = vadd.f32 %v234, %v235
    %s237 = vtos %v236
    %v238 = vlaneseq
    %v239 = vshrl.u32 %v238, 7
    %v240 = vlaneseq
    %v241 = vand.u32 %v240, 127
    %vm242 = vcmp.eq.s32.totalorder %v239, %v241
    %v243 = vsel %vm242, 1, 0
    %v244 = vcvt.s32.f32 %v243
    %v245 = vmul.f32 %v172, %v244
    %v246 = vmul.f32 %v173, %v244
    %vm247 = vcmask 27648
    %v248 = vsel %vm247, %v245, 0.0
    %v249 = vrot.slane %v248, 4
    %v250 = vadd.f32 %v248, %v249
    %v251 = vrot.slane %v250, 2
    %v252 = vadd.f32 %v250, %v251
    %v253 = vrot.slane %v252, 1
    %v254 = vadd.f32 %v252, %v253
    %v255 = vsel %vm247, %v246, 0.0
    %v256 = vrot.slane %v255, 4
    %v257 = vadd.f32 %v255, %v256
    %v258 = vrot.slane %v257, 2
    %v259 = vadd.f32 %v257, %v258
    %v260 = vrot.slane %v259, 1
    %v261 = vadd.f32 %v259, %v260
    %v262 = vmul.f32 %v203, %v244
    %v263 = vmul.f32 %v204, %v244
    %v264 = vsel %vm247, %v262, 0.0
    %v265 = vrot.slane %v264, 4
    %v266 = vadd.f32 %v264, %v265
    %v267 = vrot.slane %v266, 2
    %v268 = vadd.f32 %v266, %v267
    %v269 = vrot.slane %v268, 1
    %v270 = vadd.f32 %v268, %v269
    %v271 = vsel %vm247, %v263, 0.0
    %v272 = vrot.slane %v271, 4
    %v273 = vadd.f32 %v271, %v272
    %v274 = vrot.slane %v273, 2
    %v275 = vadd.f32 %v273, %v274
    %v276 = vrot.slane %v275, 1
    %v277 = vadd.f32 %v275, %v276
    %v278 = vsub.f32 %v172, %v254
    %v279 = vsub.f32 %v173, %v261
    %v280 = vsub.f32 %v203, %v270
    %v281 = vsub.f32 %v204, %v277
    %v282 = vmul.f32 %v278, %v278
    %v283 = vmul.f32 %v279, %v279
    %v284 = vmul.f32 %v280, %v280
    %v285 = vmul.f32 %v281, %v281
    %v286 = vadd.f32 %v282, %v284
    %v287 = vadd.f32 %v283, %v285
    %v288 = vrsqrt.pop %v286
    %v289 = vmul.f32 %v286, %v288
    %vm290 = vcmp.eq.f32.partialorder %v286, inf
    %v291 = vsel %vm290, %v286, %v289
    %vm292 = vcmp.eq.f32.partialorder %v286, 0.0
    %v293 = vand.u32 %v286, 2147483648
    %v294 = vsel %vm292, %v293, %v291
    %v295 = vrsqrt.pop %v287
    %v296 = vmul.f32 %v287, %v295
    %vm297 = vcmp.eq.f32.partialorder %v287, inf
    %v298 = vsel %vm297, %v287, %v296
    %vm299 = vcmp.eq.f32.partialorder %v287, 0.0
    %v300 = vand.u32 %v287, 2147483648
    %v301 = vsel %vm299, %v300, %v298
    %v302 = vsub.f32 %v294, %v52
    %v303 = vsub.f32 %v301, %v53
    %v304 = vmul.f32 %v302, %v302
    %v305 = vmul.f32 %v303, %v303
    %v306 = vmul.f32 %v54, %v304
    %v307 = vmul.f32 %v55, %v305
    %v308 = vsel %vm247, %v306, 0.0
    %v309 = vsel %vm247, %v307, 0.0
    %v310 = vadd.f32 %v308, %v309
    %311 = vadd.xlane.f32.xlu0 %v310
    %v312 = vpop.xlane.xlu0 %311
    %v313 = vrot.slane %v312, 4
    %v314 = vadd.f32 %v312, %v313
    %v315 = vrot.slane %v314, 2
    %v316 = vadd.f32 %v314, %v315
    %v317 = vrot.slane %v316, 1
    %v318 = vadd.f32 %v316, %v317
    %s319 = vtos %v318
    %vm320 = vcmp.eq.s32.totalorder %v241, 0
    %v321 = vstv %s110
    %v322 = vsel %vm320, %v321, 0.0
    %vm323 = vcmp.eq.s32.totalorder %v241, 1
    %v324 = vstv %s237
    %v325 = vsel %vm323, %v324, 0.0
    %v326 = vadd.f32 %v322, %v325
    %vm327 = vcmp.eq.s32.totalorder %v241, 2
    %v328 = vstv %s319
    %v329 = vsel %vm327, %v328, 0.0
    %v330 = vadd.f32 %v326, %v329
    %331 = vst [vmem:[#allocation5] sm:$0x1] %v330
    // Predicated region
    $region38: #{tpu_custom_call.1} parent=1 // pred_check
      _
    $region39: #{tpu_custom_call.1} parent=1 // pred_check_branch
      %333 = sbr.rel (0) target = $region41
    $region40: #{tpu_custom_call.1} parent=1 // pred_region
      %s335 = ssub.s32 16, 16
      %336 = vsyncadd [#allocation4], %s335
      %s338 = sshll.u32 [#allocation5], 4
      %s339 = int_to_ptr.vmem [resolvable:$true] %s338
      %341 = dma.vmem_to_hbm [thread:$0]  %s339, 16, %s8, [#allocation4]
    $region41: #{tpu_custom_call.1} parent=1 // pred_fallthru
      _
    // Predicated region
    $region42: #{tpu_custom_call.1} parent=1 // pred_check
      _
    $region43: #{tpu_custom_call.1} parent=1 // pred_check_branch
      %343 = sbr.rel (0) target = $region45
    $region44: #{tpu_custom_call.1} parent=1 // pred_region
      %344 = dma.done [#allocation4], 16
    $region45: #{tpu_custom_call.1} parent=1 // pred_fallthru
      _
    %345 = vsyncpa [#allocation3], 1
    %346 = vsyncpa [#allocation4], 1

</llo_original>
